<compile_context>
chip_gen: v7x
topology: tpu7x:2x2x1
jax: 0.10.0
libtpu: 0.0.40
codegen_flags: <defaults>
</compile_context>

<pallas_src>
import jax
import jax.numpy as jnp
from jax import lax
from jax.experimental import pallas as pl
from jax.experimental.pallas import tpu as pltpu

LN_EPS = 1e-12  # BERT/RoBERTa layer_norm_eps


def _round_up(x, m):
    return ((x + m - 1) // m) * m


def _fused_kernel(hs_ref, inp_ref,
                  wd_ref, bd_ref,
                  w1_ref, b1_ref,
                  w2_ref, b2_ref,
                  gfc2_ref, gamma_ref, beta_ref,
                  out_ref):
    """One (tm, H) row-block: dense -> adapter -> residuals -> LayerNorm."""
    # self_output.dense : bf16 x bf16 -> f32 accumulation on the MXU.
    x = hs_ref[...].astype(jnp.bfloat16)
    y = jnp.dot(x, wd_ref[...], preferred_element_type=jnp.float32) + bd_ref[...]
    # dropout: identity in eval mode.

    # adapter fc1 + ReLU   (gfc1 is folded into w2 in the wrapper)
    h = jnp.dot(y.astype(jnp.bfloat16), w1_ref[...],
                preferred_element_type=jnp.float32) + b1_ref[...]
    h = jnp.maximum(h, 0.0)

    # adapter fc2 + ReLU + gate
    h = jnp.dot(h.astype(jnp.bfloat16), w2_ref[...],
                preferred_element_type=jnp.float32) + b2_ref[...]
    h = jnp.maximum(h, 0.0) * gfc2_ref[...]

    # adapter residual + outer residual + LayerNorm, all in f32.
    z = y + h + inp_ref[...].astype(jnp.float32)
    mean = jnp.mean(z, axis=-1, keepdims=True)
    cz = z - mean
    var = jnp.mean(cz * cz, axis=-1, keepdims=True)
    zn = cz * lax.rsqrt(var + LN_EPS)
    out_ref[...] = (zn * gamma_ref[...] + beta_ref[...]).astype(out_ref.dtype)


def roberta_adapted_self_output(hidden_states, input_tensor, params, t, s,
                                smax=400, tm=512):
    """mode='sequential' forward.  hidden_states/input_tensor: (B, S, H)."""
    B, S, H = hidden_states.shape
    A = params["fc1_w"].shape[0]
    M = B * S

    # ---- glue: adapter gates (embedding lookup + sigmoid, jit-safe binarize) --
    efc1 = params["efc1"][t]                                   # (A,)
    efc2 = params["efc2"][t]                                   # (H,)
    gfc1 = jax.nn.sigmoid(s * efc1)
    gfc2 = jax.nn.sigmoid(s * efc2)
    gfc1 = jnp.where(s == smax, (gfc1 > 0.5).astype(jnp.float32), gfc1)
    gfc2 = jnp.where(s == smax, (gfc2 > 0.5).astype(jnp.float32), gfc2)

    # ---- glue: param layouts (in->out), fold gfc1 into W2, pad adapter dim ----
    A_pad = _round_up(A, 128)
    wd = params["dense_w"].T.astype(jnp.bfloat16)              # (H, H)
    w1 = params["fc1_w"].T                                     # (H, A)
    w2 = gfc1[:, None] * params["fc2_w"].T                     # (A, H)  gfc1 folded
    b1 = params["fc1_b"]
    if A_pad != A:
        w1 = jnp.pad(w1, ((0, 0), (0, A_pad - A)))
        w2 = jnp.pad(w2, ((0, A_pad - A), (0, 0)))
        b1 = jnp.pad(b1, (0, A_pad - A))
    w1 = w1.astype(jnp.bfloat16)
    w2 = w2.astype(jnp.bfloat16)
    bd = params["dense_b"].reshape(1, H).astype(jnp.float32)
    b1 = b1.reshape(1, A_pad).astype(jnp.float32)
    b2 = params["fc2_b"].reshape(1, H).astype(jnp.float32)
    gfc2 = gfc2.reshape(1, H).astype(jnp.float32)
    gamma = params["ln_gamma"].reshape(1, H).astype(jnp.float32)
    beta = params["ln_beta"].reshape(1, H).astype(jnp.float32)

    # ---- row tiling: big tiles, pad rows to a multiple of tm -----------------
    tm = min(tm, _round_up(M, 8))
    M_pad = _round_up(M, tm)
    hs2d = hidden_states.reshape(M, H)
    in2d = input_tensor.reshape(M, H).astype(jnp.float32)
    if M_pad != M:
        hs2d = jnp.pad(hs2d, ((0, M_pad - M), (0, 0)))
        in2d = jnp.pad(in2d, ((0, M_pad - M), (0, 0)))
    grid = (M_pad // tm,)

    row_spec = pl.BlockSpec((tm, H), lambda i: (i, 0))

    # Scheduler hints.
    flops = 2 * M_pad * H * (H + 2 * A_pad) + 8 * M_pad * H
    bytes_accessed = (M_pad * H * (4 + 4 + 4)
                      + (H * H + 2 * H * A_pad) * 2
                      + (6 * H + 2 * A_pad) * 4)
    cost = pl.CostEstimate(flops=flops, transcendentals=M_pad,
                           bytes_accessed=bytes_accessed)

    # VMEM budget (works within v7x's 64 MiB physical / smaller scoped defaults).
    vmem_est = (2 * 2 * tm * H * 4                     # hs + inp blocks, dbl-buffered f32
                + 2 * tm * H * 4                       # out blocks
                + 2 * (H * H + 2 * H * A_pad) * 2      # weights (bf16), worst-case x2
                + 8 * tm * max(H, A_pad) * 4)          # f32 intermediates headroom
    vmem_limit = int(min(max(2 * vmem_est, 32 * 1024 * 1024), 64 * 1024 * 1024))

    def _run(single_buffer_weights):
        if single_buffer_weights:
            # Grid-invariant params: fetched once, no need to double-buffer.
            inv = lambda shape: pl.BlockSpec(shape, lambda i: (0, 0),
                                             pipeline_mode=pl.Buffered(1))
        else:
            inv = lambda shape: pl.BlockSpec(shape, lambda i: (0, 0))
        call = pl.pallas_call(
            _fused_kernel,
            out_shape=jax.ShapeDtypeStruct((M_pad, H), hidden_states.dtype),
            grid_spec=pltpu.PrefetchScalarGridSpec(
                num_scalar_prefetch=0,
                grid=grid,
                in_specs=[
                    row_spec,                 # hidden_states block
                    row_spec,                 # input_tensor block (residual)
                    inv((H, H)),              # dense W^T       (bf16)
                    inv((1, H)),              # dense b
                    inv((H, A_pad)),          # fc1 W^T, padded (bf16)
                    inv((1, A_pad)),          # fc1 b, padded
                    inv((A_pad, H)),          # fc2 W^T * gfc1  (bf16)
                    inv((1, H)),              # fc2 b
                    inv((1, H)),              # gfc2
                    inv((1, H)),              # LN gamma
                    inv((1, H)),              # LN beta
                ],
                out_specs=row_spec,
            ),
            compiler_params=pltpu.CompilerParams(
                dimension_semantics=("parallel",),
                vmem_limit_bytes=vmem_limit),
            cost_estimate=cost,
        )
        return jax.block_until_ready(
            call(hs2d, in2d, wd, bd, w1, b1, w2, b2, gfc2, gamma, beta))

    try:
        out2d = _run(True)
    except Exception:
        # Fallback if this jax build rejects pipeline_mode=pl.Buffered(1).
        out2d = _run(False)

    if M_pad != M:
        out2d = out2d[:M]
    return out2d.reshape(B, S, H)

# TODO(synk): mode='parallel' branch not implemented; this kernel covers mode='sequential'.


def _init_params(key, hidden_size, adapter_size, ntasks):
    ks = jax.random.split(key, 8)
    scale = 0.02
    return {
        "dense_w": scale * jax.random.normal(ks[0], (hidden_size, hidden_size), jnp.float32),
        "dense_b": scale * jax.random.normal(ks[1], (hidden_size,), jnp.float32),
        "fc1_w": scale * jax.random.normal(ks[2], (adapter_size, hidden_size), jnp.float32),
        "fc1_b": scale * jax.random.normal(ks[3], (adapter_size,), jnp.float32),
        "fc2_w": scale * jax.random.normal(ks[4], (hidden_size, adapter_size), jnp.float32),
        "fc2_b": scale * jax.random.normal(ks[5], (hidden_size,), jnp.float32),
        "efc1": jax.random.normal(ks[6], (ntasks, adapter_size), jnp.float32),
        "efc2": jax.random.normal(ks[7], (ntasks, hidden_size), jnp.float32),
        "ln_gamma": jnp.ones((hidden_size,), jnp.float32),
        "ln_beta": jnp.zeros((hidden_size,), jnp.float32),
    }


def _reference(hidden_states, input_tensor, params, t, s, smax=400):
    """Pure-JAX f32 reference for correctness check."""
    efc1 = params["efc1"][t]
    efc2 = params["efc2"][t]
    gfc1 = jax.nn.sigmoid(s * efc1)
    gfc2 = jax.nn.sigmoid(s * efc2)
    gfc1 = jnp.where(s == smax, (gfc1 > 0.5).astype(jnp.float32), gfc1)
    gfc2 = jnp.where(s == smax, (gfc2 > 0.5).astype(jnp.float32), gfc2)
    y = hidden_states @ params["dense_w"].T + params["dense_b"]
    h = jax.nn.relu(y @ params["fc1_w"].T + params["fc1_b"]) * gfc1
    h = jax.nn.relu(h @ params["fc2_w"].T + params["fc2_b"]) * gfc2
    z = y + h + input_tensor
    mean = jnp.mean(z, axis=-1, keepdims=True)
    var = jnp.mean((z - mean) ** 2, axis=-1, keepdims=True)
    zn = (z - mean) / jnp.sqrt(var + LN_EPS)
    return zn * params["ln_gamma"] + params["ln_beta"]


if __name__ == "__main__":
    B, S, H, A, NTASKS = 2, 8, 32, 16, 4
    key = jax.random.PRNGKey(0)
    kp, kh, ki = jax.random.split(key, 3)

    params = _init_params(kp, H, A, NTASKS)
    hidden_states = jax.random.normal(kh, (B, S, H), jnp.float32)
    input_tensor = jax.random.normal(ki, (B, S, H), jnp.float32)
    t = 1          # task id
    s = 100.0      # annealing scalar (s != smax -> soft gates)

    out = roberta_adapted_self_output(hidden_states, input_tensor, params, t, s)
    out = jax.block_until_ready(out)

    ref = _reference(hidden_states, input_tensor, params, t, s)
    assert out.shape == (B, S, H)
    max_err = float(jnp.max(jnp.abs(out - ref)))
    # bf16 matmul operands with f32 accumulation -> loosened tolerance.
    assert max_err < 2e-2, f"mismatch vs reference: max abs err = {max_err}"

    print("KERNEL_OK")
</pallas_src>

<mosaic_0001>
module attributes {stable_mosaic.version = 11 : i64} {
  func.func @_fused_kernel(%arg0: i32, %arg1: memref<16x32xf32, #tpu.memory_space<vmem>>, %arg2: memref<16x32xf32, #tpu.memory_space<vmem>>, %arg3: memref<32x32xbf16, #tpu.memory_space<vmem>>, %arg4: memref<1x32xf32, #tpu.memory_space<vmem>>, %arg5: memref<32x128xbf16, #tpu.memory_space<vmem>>, %arg6: memref<1x128xf32, #tpu.memory_space<vmem>>, %arg7: memref<128x32xbf16, #tpu.memory_space<vmem>>, %arg8: memref<1x32xf32, #tpu.memory_space<vmem>>, %arg9: memref<1x32xf32, #tpu.memory_space<vmem>>, %arg10: memref<1x32xf32, #tpu.memory_space<vmem>>, %arg11: memref<1x32xf32, #tpu.memory_space<vmem>>, %arg12: memref<16x32xf32, #tpu.memory_space<vmem>>) attributes {dimension_semantics = [#tpu.dimension_semantics<parallel>], iteration_bounds = array<i64: 1>, scalar_prefetch = 0 : i64, scratch_operands = 0 : i64, tpu.core_type = #tpu.core_type<tc>, window_params = [{transform_indices = @transform_0, window_bounds = array<i64: 16, 32>}, {transform_indices = @transform_1, window_bounds = array<i64: 16, 32>}, {pipeline_mode = #tpu.pipeline_mode<synchronous>, transform_indices = @transform_2, window_bounds = array<i64: 32, 32>}, {pipeline_mode = #tpu.pipeline_mode<synchronous>, transform_indices = @transform_3, window_bounds = array<i64: 1, 32>}, {pipeline_mode = #tpu.pipeline_mode<synchronous>, transform_indices = @transform_4, window_bounds = array<i64: 32, 128>}, {pipeline_mode = #tpu.pipeline_mode<synchronous>, transform_indices = @transform_5, window_bounds = array<i64: 1, 128>}, {pipeline_mode = #tpu.pipeline_mode<synchronous>, transform_indices = @transform_6, window_bounds = array<i64: 128, 32>}, {pipeline_mode = #tpu.pipeline_mode<synchronous>, transform_indices = @transform_7, window_bounds = array<i64: 1, 32>}, {pipeline_mode = #tpu.pipeline_mode<synchronous>, transform_indices = @transform_8, window_bounds = array<i64: 1, 32>}, {pipeline_mode = #tpu.pipeline_mode<synchronous>, transform_indices = @transform_9, window_bounds = array<i64: 1, 32>}, {pipeline_mode = #tpu.pipeline_mode<synchronous>, transform_indices = @transform_10, window_bounds = array<i64: 1, 32>}, {transform_indices = @transform_11, window_bounds = array<i64: 16, 32>}]} {
    %c0 = arith.constant 0 : index
    %c0_0 = arith.constant 0 : index
    %0 = vector.load %arg1[%c0, %c0_0] : memref<16x32xf32, #tpu.memory_space<vmem>>, vector<16x32xf32>
    %1 = arith.truncf %0 : vector<16x32xf32> to vector<16x32xbf16>
    %c0_1 = arith.constant 0 : index
    %c0_2 = arith.constant 0 : index
    %2 = vector.load %arg3[%c0_1, %c0_2] : memref<32x32xbf16, #tpu.memory_space<vmem>>, vector<32x32xbf16>
    %cst = arith.constant dense<0.000000e+00> : vector<16x32xf32>
    %3 = tpu.matmul %1, %2, %cst {dimension_numbers = #tpu.dot_dimension_numbers<[1], [0], [0], [1], [0, 0, 1, 1], [], []>} : vector<16x32xbf16>, vector<32x32xbf16>, vector<16x32xf32> -> vector<16x32xf32>
    %c0_3 = arith.constant 0 : index
    %c0_4 = arith.constant 0 : index
    %4 = vector.load %arg4[%c0_3, %c0_4] : memref<1x32xf32, #tpu.memory_space<vmem>>, vector<1x32xf32>
    %5 = vector.broadcast %4 : vector<1x32xf32> to vector<16x32xf32>
    %6 = arith.addf %3, %5 : vector<16x32xf32>
    %7 = arith.truncf %6 : vector<16x32xf32> to vector<16x32xbf16>
    %c0_5 = arith.constant 0 : index
    %c0_6 = arith.constant 0 : index
    %8 = vector.load %arg5[%c0_5, %c0_6] : memref<32x128xbf16, #tpu.memory_space<vmem>>, vector<32x128xbf16>
    %cst_7 = arith.constant dense<0.000000e+00> : vector<16x128xf32>
    %9 = tpu.matmul %7, %8, %cst_7 {dimension_numbers = #tpu.dot_dimension_numbers<[1], [0], [0], [1], [0, 0, 1, 1], [], []>} : vector<16x32xbf16>, vector<32x128xbf16>, vector<16x128xf32> -> vector<16x128xf32>
    %c0_8 = arith.constant 0 : index
    %c0_9 = arith.constant 0 : index
    %10 = vector.load %arg6[%c0_8, %c0_9] : memref<1x128xf32, #tpu.memory_space<vmem>>, vector<1x128xf32>
    %11 = vector.broadcast %10 : vector<1x128xf32> to vector<16x128xf32>
    %12 = arith.addf %9, %11 : vector<16x128xf32>
    %cst_10 = arith.constant 0.000000e+00 : f32
    %13 = vector.broadcast %cst_10 : f32 to vector<16x128xf32>
    %14 = arith.maximumf %12, %13 : vector<16x128xf32>
    %15 = arith.truncf %14 : vector<16x128xf32> to vector<16x128xbf16>
    %c0_11 = arith.constant 0 : index
    %c0_12 = arith.constant 0 : index
    %16 = vector.load %arg7[%c0_11, %c0_12] : memref<128x32xbf16, #tpu.memory_space<vmem>>, vector<128x32xbf16>
    %cst_13 = arith.constant dense<0.000000e+00> : vector<16x32xf32>
    %17 = tpu.matmul %15, %16, %cst_13 {dimension_numbers = #tpu.dot_dimension_numbers<[1], [0], [0], [1], [0, 0, 1, 1], [], []>} : vector<16x128xbf16>, vector<128x32xbf16>, vector<16x32xf32> -> vector<16x32xf32>
    %c0_14 = arith.constant 0 : index
    %c0_15 = arith.constant 0 : index
    %18 = vector.load %arg8[%c0_14, %c0_15] : memref<1x32xf32, #tpu.memory_space<vmem>>, vector<1x32xf32>
    %19 = vector.broadcast %18 : vector<1x32xf32> to vector<16x32xf32>
    %20 = arith.addf %17, %19 : vector<16x32xf32>
    %cst_16 = arith.constant 0.000000e+00 : f32
    %21 = vector.broadcast %cst_16 : f32 to vector<16x32xf32>
    %22 = arith.maximumf %20, %21 : vector<16x32xf32>
    %c0_17 = arith.constant 0 : index
    %c0_18 = arith.constant 0 : index
    %23 = vector.load %arg9[%c0_17, %c0_18] : memref<1x32xf32, #tpu.memory_space<vmem>>, vector<1x32xf32>
    %24 = vector.broadcast %23 : vector<1x32xf32> to vector<16x32xf32>
    %25 = arith.mulf %22, %24 : vector<16x32xf32>
    %26 = arith.addf %6, %25 : vector<16x32xf32>
    %c0_19 = arith.constant 0 : index
    %c0_20 = arith.constant 0 : index
    %27 = vector.load %arg2[%c0_19, %c0_20] : memref<16x32xf32, #tpu.memory_space<vmem>>, vector<16x32xf32>
    %28 = arith.addf %26, %27 : vector<16x32xf32>
    %cst_21 = arith.constant dense<0.000000e+00> : vector<16xf32>
    %29 = vector.multi_reduction <add>, %28, %cst_21 [1] : vector<16x32xf32> to vector<16xf32>
    %30 = vector.shape_cast %29 : vector<16xf32> to vector<16x1xf32>
    %cst_22 = arith.constant 3.200000e+01 : f32
    %31 = vector.broadcast %cst_22 : f32 to vector<16x1xf32>
    %32 = arith.divf %30, %31 : vector<16x1xf32>
    %33 = vector.broadcast %32 : vector<16x1xf32> to vector<16x32xf32>
    %34 = arith.subf %28, %33 : vector<16x32xf32>
    %35 = arith.mulf %34, %34 : vector<16x32xf32>
    %cst_23 = arith.constant dense<0.000000e+00> : vector<16xf32>
    %36 = vector.multi_reduction <add>, %35, %cst_23 [1] : vector<16x32xf32> to vector<16xf32>
    %37 = vector.shape_cast %36 : vector<16xf32> to vector<16x1xf32>
    %cst_24 = arith.constant 3.200000e+01 : f32
    %38 = vector.broadcast %cst_24 : f32 to vector<16x1xf32>
    %39 = arith.divf %37, %38 : vector<16x1xf32>
    %cst_25 = arith.constant 9.99999996E-13 : f32
    %40 = vector.broadcast %cst_25 : f32 to vector<16x1xf32>
    %41 = arith.addf %39, %40 : vector<16x1xf32>
    %42 = math.rsqrt %41 : vector<16x1xf32>
    %43 = vector.broadcast %42 : vector<16x1xf32> to vector<16x32xf32>
    %44 = arith.mulf %34, %43 : vector<16x32xf32>
    %c0_26 = arith.constant 0 : index
    %c0_27 = arith.constant 0 : index
    %45 = vector.load %arg10[%c0_26, %c0_27] : memref<1x32xf32, #tpu.memory_space<vmem>>, vector<1x32xf32>
    %46 = vector.broadcast %45 : vector<1x32xf32> to vector<16x32xf32>
    %47 = arith.mulf %44, %46 : vector<16x32xf32>
    %c0_28 = arith.constant 0 : index
    %c0_29 = arith.constant 0 : index
    %48 = vector.load %arg11[%c0_28, %c0_29] : memref<1x32xf32, #tpu.memory_space<vmem>>, vector<1x32xf32>
    %49 = vector.broadcast %48 : vector<1x32xf32> to vector<16x32xf32>
    %50 = arith.addf %47, %49 : vector<16x32xf32>
    %c0_30 = arith.constant 0 : index
    %c0_31 = arith.constant 0 : index
    %51 = vector.load %arg12[%c0_30, %c0_31] : memref<16x32xf32, #tpu.memory_space<vmem>>, vector<16x32xf32>
    tpu.vector_store %arg12[%c0_30, %c0_31], %50 {strides = array<i32>} : memref<16x32xf32, #tpu.memory_space<vmem>>, vector<16x32xf32>,
    return
  }
  func.func @transform_0(%arg0: i32) -> (i32, i32) {
    %c0_i32 = arith.constant 0 : i32
    %c0_i32_0 = arith.constant 0 : i32
    return %arg0, %c0_i32 : i32, i32
  }
  func.func @transform_1(%arg0: i32) -> (i32, i32) {
    %c0_i32 = arith.constant 0 : i32
    %c0_i32_0 = arith.constant 0 : i32
    return %arg0, %c0_i32 : i32, i32
  }
  func.func @transform_2(%arg0: i32) -> (i32, i32) {
    %c0_i32 = arith.constant 0 : i32
    %c0_i32_0 = arith.constant 0 : i32
    %c0_i32_1 = arith.constant 0 : i32
    return %c0_i32, %c0_i32_0 : i32, i32
  }
  func.func @transform_3(%arg0: i32) -> (i32, i32) {
    %c0_i32 = arith.constant 0 : i32
    %c0_i32_0 = arith.constant 0 : i32
    %c0_i32_1 = arith.constant 0 : i32
    return %c0_i32, %c0_i32_0 : i32, i32
  }
  func.func @transform_4(%arg0: i32) -> (i32, i32) {
    %c0_i32 = arith.constant 0 : i32
    %c0_i32_0 = arith.constant 0 : i32
    %c0_i32_1 = arith.constant 0 : i32
    return %c0_i32, %c0_i32_0 : i32, i32
  }
  func.func @transform_5(%arg0: i32) -> (i32, i32) {
    %c0_i32 = arith.constant 0 : i32
    %c0_i32_0 = arith.constant 0 : i32
    %c0_i32_1 = arith.constant 0 : i32
    return %c0_i32, %c0_i32_0 : i32, i32
  }
  func.func @transform_6(%arg0: i32) -> (i32, i32) {
    %c0_i32 = arith.constant 0 : i32
    %c0_i32_0 = arith.constant 0 : i32
    %c0_i32_1 = arith.constant 0 : i32
    return %c0_i32, %c0_i32_0 : i32, i32
  }
  func.func @transform_7(%arg0: i32) -> (i32, i32) {
    %c0_i32 = arith.constant 0 : i32
    %c0_i32_0 = arith.constant 0 : i32
    %c0_i32_1 = arith.constant 0 : i32
    return %c0_i32, %c0_i32_0 : i32, i32
  }
  func.func @transform_8(%arg0: i32) -> (i32, i32) {
    %c0_i32 = arith.constant 0 : i32
    %c0_i32_0 = arith.constant 0 : i32
    %c0_i32_1 = arith.constant 0 : i32
    return %c0_i32, %c0_i32_0 : i32, i32
  }
  func.func @transform_9(%arg0: i32) -> (i32, i32) {
    %c0_i32 = arith.constant 0 : i32
    %c0_i32_0 = arith.constant 0 : i32
    %c0_i32_1 = arith.constant 0 : i32
    return %c0_i32, %c0_i32_0 : i32, i32
  }
  func.func @transform_10(%arg0: i32) -> (i32, i32) {
    %c0_i32 = arith.constant 0 : i32
    %c0_i32_0 = arith.constant 0 : i32
    %c0_i32_1 = arith.constant 0 : i32
    return %c0_i32, %c0_i32_0 : i32, i32
  }
  func.func @transform_11(%arg0: i32) -> (i32, i32) {
    %c0_i32 = arith.constant 0 : i32
    %c0_i32_0 = arith.constant 0 : i32
    return %arg0, %c0_i32 : i32, i32
  }
}

module attributes {stable_mosaic.version = 11 : i64} {
  func.func @_fused_kernel(%arg0: i32, %arg1: memref<16x32xf32, #tpu.memory_space<vmem>>, %arg2: memref<16x32xf32, #tpu.memory_space<vmem>>, %arg3: memref<32x32xbf16, #tpu.memory_space<vmem>>, %arg4: memref<1x32xf32, #tpu.memory_space<vmem>>, %arg5: memref<32x128xbf16, #tpu.memory_space<vmem>>, %arg6: memref<1x128xf32, #tpu.memory_space<vmem>>, %arg7: memref<128x32xbf16, #tpu.memory_space<vmem>>, %arg8: memref<1x32xf32, #tpu.memory_space<vmem>>, %arg9: memref<1x32xf32, #tpu.memory_space<vmem>>, %arg10: memref<1x32xf32, #tpu.memory_space<vmem>>, %arg11: memref<1x32xf32, #tpu.memory_space<vmem>>, %arg12: memref<16x32xf32, #tpu.memory_space<vmem>>) attributes {dimension_semantics = [#tpu.dimension_semantics<parallel>], iteration_bounds = array<i64: 1>, scalar_prefetch = 0 : i64, scratch_operands = 0 : i64, tpu.core_type = #tpu.core_type<tc>, window_params = [{transform_indices = @transform_0, window_bounds = array<i64: 16, 32>}, {transform_indices = @transform_1, window_bounds = array<i64: 16, 32>}, {pipeline_mode = #tpu.pipeline_mode<synchronous>, transform_indices = @transform_2, window_bounds = array<i64: 32, 32>}, {pipeline_mode = #tpu.pipeline_mode<synchronous>, transform_indices = @transform_3, window_bounds = array<i64: 1, 32>}, {pipeline_mode = #tpu.pipeline_mode<synchronous>, transform_indices = @transform_4, window_bounds = array<i64: 32, 128>}, {pipeline_mode = #tpu.pipeline_mode<synchronous>, transform_indices = @transform_5, window_bounds = array<i64: 1, 128>}, {pipeline_mode = #tpu.pipeline_mode<synchronous>, transform_indices = @transform_6, window_bounds = array<i64: 128, 32>}, {pipeline_mode = #tpu.pipeline_mode<synchronous>, transform_indices = @transform_7, window_bounds = array<i64: 1, 32>}, {pipeline_mode = #tpu.pipeline_mode<synchronous>, transform_indices = @transform_8, window_bounds = array<i64: 1, 32>}, {pipeline_mode = #tpu.pipeline_mode<synchronous>, transform_indices = @transform_9, window_bounds = array<i64: 1, 32>}, {pipeline_mode = #tpu.pipeline_mode<synchronous>, transform_indices = @transform_10, window_bounds = array<i64: 1, 32>}, {transform_indices = @transform_11, window_bounds = array<i64: 16, 32>}]} {
    %c0 = arith.constant 0 : index
    %c0_0 = arith.constant 0 : index
    %0 = vector.load %arg1[%c0, %c0_0] : memref<16x32xf32, #tpu.memory_space<vmem>>, vector<16x32xf32>
    %1 = arith.truncf %0 : vector<16x32xf32> to vector<16x32xbf16>
    %c0_1 = arith.constant 0 : index
    %c0_2 = arith.constant 0 : index
    %2 = vector.load %arg3[%c0_1, %c0_2] : memref<32x32xbf16, #tpu.memory_space<vmem>>, vector<32x32xbf16>
    %cst = arith.constant dense<0.000000e+00> : vector<16x32xf32>
    %3 = tpu.matmul %1, %2, %cst {dimension_numbers = #tpu.dot_dimension_numbers<[1], [0], [0], [1], [0, 0, 1, 1], [], []>} : vector<16x32xbf16>, vector<32x32xbf16>, vector<16x32xf32> -> vector<16x32xf32>
    %c0_3 = arith.constant 0 : index
    %c0_4 = arith.constant 0 : index
    %4 = vector.load %arg4[%c0_3, %c0_4] : memref<1x32xf32, #tpu.memory_space<vmem>>, vector<1x32xf32>
    %5 = vector.broadcast %4 : vector<1x32xf32> to vector<16x32xf32>
    %6 = arith.addf %3, %5 : vector<16x32xf32>
    %7 = arith.truncf %6 : vector<16x32xf32> to vector<16x32xbf16>
    %c0_5 = arith.constant 0 : index
    %c0_6 = arith.constant 0 : index
    %8 = vector.load %arg5[%c0_5, %c0_6] : memref<32x128xbf16, #tpu.memory_space<vmem>>, vector<32x128xbf16>
    %cst_7 = arith.constant dense<0.000000e+00> : vector<16x128xf32>
    %9 = tpu.matmul %7, %8, %cst_7 {dimension_numbers = #tpu.dot_dimension_numbers<[1], [0], [0], [1], [0, 0, 1, 1], [], []>} : vector<16x32xbf16>, vector<32x128xbf16>, vector<16x128xf32> -> vector<16x128xf32>
    %c0_8 = arith.constant 0 : index
    %c0_9 = arith.constant 0 : index
    %10 = vector.load %arg6[%c0_8, %c0_9] : memref<1x128xf32, #tpu.memory_space<vmem>>, vector<1x128xf32>
    %11 = vector.broadcast %10 : vector<1x128xf32> to vector<16x128xf32>
    %12 = arith.addf %9, %11 : vector<16x128xf32>
    %cst_10 = arith.constant 0.000000e+00 : f32
    %13 = vector.broadcast %cst_10 : f32 to vector<16x128xf32>
    %14 = arith.maximumf %12, %13 : vector<16x128xf32>
    %15 = arith.truncf %14 : vector<16x128xf32> to vector<16x128xbf16>
    %c0_11 = arith.constant 0 : index
    %c0_12 = arith.constant 0 : index
    %16 = vector.load %arg7[%c0_11, %c0_12] : memref<128x32xbf16, #tpu.memory_space<vmem>>, vector<128x32xbf16>
    %cst_13 = arith.constant dense<0.000000e+00> : vector<16x32xf32>
    %17 = tpu.matmul %15, %16, %cst_13 {dimension_numbers = #tpu.dot_dimension_numbers<[1], [0], [0], [1], [0, 0, 1, 1], [], []>} : vector<16x128xbf16>, vector<128x32xbf16>, vector<16x32xf32> -> vector<16x32xf32>
    %c0_14 = arith.constant 0 : index
    %c0_15 = arith.constant 0 : index
    %18 = vector.load %arg8[%c0_14, %c0_15] : memref<1x32xf32, #tpu.memory_space<vmem>>, vector<1x32xf32>
    %19 = vector.broadcast %18 : vector<1x32xf32> to vector<16x32xf32>
    %20 = arith.addf %17, %19 : vector<16x32xf32>
    %cst_16 = arith.constant 0.000000e+00 : f32
    %21 = vector.broadcast %cst_16 : f32 to vector<16x32xf32>
    %22 = arith.maximumf %20, %21 : vector<16x32xf32>
    %c0_17 = arith.constant 0 : index
    %c0_18 = arith.constant 0 : index
    %23 = vector.load %arg9[%c0_17, %c0_18] : memref<1x32xf32, #tpu.memory_space<vmem>>, vector<1x32xf32>
    %24 = vector.broadcast %23 : vector<1x32xf32> to vector<16x32xf32>
    %25 = arith.mulf %22, %24 : vector<16x32xf32>
    %26 = arith.addf %6, %25 : vector<16x32xf32>
    %c0_19 = arith.constant 0 : index
    %c0_20 = arith.constant 0 : index
    %27 = vector.load %arg2[%c0_19, %c0_20] : memref<16x32xf32, #tpu.memory_space<vmem>>, vector<16x32xf32>
    %28 = arith.addf %26, %27 : vector<16x32xf32>
    %cst_21 = arith.constant dense<0.000000e+00> : vector<16xf32>
    %29 = vector.multi_reduction <add>, %28, %cst_21 [1] : vector<16x32xf32> to vector<16xf32>
    %30 = vector.shape_cast %29 : vector<16xf32> to vector<16x1xf32>
    %cst_22 = arith.constant 3.200000e+01 : f32
    %31 = vector.broadcast %cst_22 : f32 to vector<16x1xf32>
    %32 = arith.divf %30, %31 : vector<16x1xf32>
    %33 = vector.broadcast %32 : vector<16x1xf32> to vector<16x32xf32>
    %34 = arith.subf %28, %33 : vector<16x32xf32>
    %35 = arith.mulf %34, %34 : vector<16x32xf32>
    %cst_23 = arith.constant dense<0.000000e+00> : vector<16xf32>
    %36 = vector.multi_reduction <add>, %35, %cst_23 [1] : vector<16x32xf32> to vector<16xf32>
    %37 = vector.shape_cast %36 : vector<16xf32> to vector<16x1xf32>
    %cst_24 = arith.constant 3.200000e+01 : f32
    %38 = vector.broadcast %cst_24 : f32 to vector<16x1xf32>
    %39 = arith.divf %37, %38 : vector<16x1xf32>
    %cst_25 = arith.constant 9.99999996E-13 : f32
    %40 = vector.broadcast %cst_25 : f32 to vector<16x1xf32>
    %41 = arith.addf %39, %40 : vector<16x1xf32>
    %42 = math.rsqrt %41 : vector<16x1xf32>
    %43 = vector.broadcast %42 : vector<16x1xf32> to vector<16x32xf32>
    %44 = arith.mulf %34, %43 : vector<16x32xf32>
    %c0_26 = arith.constant 0 : index
    %c0_27 = arith.constant 0 : index
    %45 = vector.load %arg10[%c0_26, %c0_27] : memref<1x32xf32, #tpu.memory_space<vmem>>, vector<1x32xf32>
    %46 = vector.broadcast %45 : vector<1x32xf32> to vector<16x32xf32>
    %47 = arith.mulf %44, %46 : vector<16x32xf32>
    %c0_28 = arith.constant 0 : index
    %c0_29 = arith.constant 0 : index
    %48 = vector.load %arg11[%c0_28, %c0_29] : memref<1x32xf32, #tpu.memory_space<vmem>>, vector<1x32xf32>
    %49 = vector.broadcast %48 : vector<1x32xf32> to vector<16x32xf32>
    %50 = arith.addf %47, %49 : vector<16x32xf32>
    %c0_30 = arith.constant 0 : index
    %c0_31 = arith.constant 0 : index
    %51 = vector.load %arg12[%c0_30, %c0_31] : memref<16x32xf32, #tpu.memory_space<vmem>>, vector<16x32xf32>
    tpu.vector_store %arg12[%c0_30, %c0_31], %50 {strides = array<i32>} : memref<16x32xf32, #tpu.memory_space<vmem>>, vector<16x32xf32>,
    return
  }
  func.func @transform_0(%arg0: i32) -> (i32, i32) {
    %c0_i32 = arith.constant 0 : i32
    %c0_i32_0 = arith.constant 0 : i32
    return %arg0, %c0_i32 : i32, i32
  }
  func.func @transform_1(%arg0: i32) -> (i32, i32) {
    %c0_i32 = arith.constant 0 : i32
    %c0_i32_0 = arith.constant 0 : i32
    return %arg0, %c0_i32 : i32, i32
  }
  func.func @transform_2(%arg0: i32) -> (i32, i32) {
    %c0_i32 = arith.constant 0 : i32
    %c0_i32_0 = arith.constant 0 : i32
    %c0_i32_1 = arith.constant 0 : i32
    return %c0_i32, %c0_i32_0 : i32, i32
  }
  func.func @transform_3(%arg0: i32) -> (i32, i32) {
    %c0_i32 = arith.constant 0 : i32
    %c0_i32_0 = arith.constant 0 : i32
    %c0_i32_1 = arith.constant 0 : i32
    return %c0_i32, %c0_i32_0 : i32, i32
  }
  func.func @transform_4(%arg0: i32) -> (i32, i32) {
    %c0_i32 = arith.constant 0 : i32
    %c0_i32_0 = arith.constant 0 : i32
    %c0_i32_1 = arith.constant 0 : i32
    return %c0_i32, %c0_i32_0 : i32, i32
  }
  func.func @transform_5(%arg0: i32) -> (i32, i32) {
    %c0_i32 = arith.constant 0 : i32
    %c0_i32_0 = arith.constant 0 : i32
    %c0_i32_1 = arith.constant 0 : i32
    return %c0_i32, %c0_i32_0 : i32, i32
  }
  func.func @transform_6(%arg0: i32) -> (i32, i32) {
    %c0_i32 = arith.constant 0 : i32
    %c0_i32_0 = arith.constant 0 : i32
    %c0_i32_1 = arith.constant 0 : i32
    return %c0_i32, %c0_i32_0 : i32, i32
  }
  func.func @transform_7(%arg0: i32) -> (i32, i32) {
    %c0_i32 = arith.constant 0 : i32
    %c0_i32_0 = arith.constant 0 : i32
    %c0_i32_1 = arith.constant 0 : i32
    return %c0_i32, %c0_i32_0 : i32, i32
  }
  func.func @transform_8(%arg0: i32) -> (i32, i32) {
    %c0_i32 = arith.constant 0 : i32
    %c0_i32_0 = arith.constant 0 : i32
    %c0_i32_1 = arith.constant 0 : i32
    return %c0_i32, %c0_i32_0 : i32, i32
  }
  func.func @transform_9(%arg0: i32) -> (i32, i32) {
    %c0_i32 = arith.constant 0 : i32
    %c0_i32_0 = arith.constant 0 : i32
    %c0_i32_1 = arith.constant 0 : i32
    return %c0_i32, %c0_i32_0 : i32, i32
  }
  func.func @transform_10(%arg0: i32) -> (i32, i32) {
    %c0_i32 = arith.constant 0 : i32
    %c0_i32_0 = arith.constant 0 : i32
    %c0_i32_1 = arith.constant 0 : i32
    return %c0_i32, %c0_i32_0 : i32, i32
  }
  func.func @transform_11(%arg0: i32) -> (i32, i32) {
    %c0_i32 = arith.constant 0 : i32
    %c0_i32_0 = arith.constant 0 : i32
    return %arg0, %c0_i32 : i32, i32
  }
}

</mosaic_0001>

<llo_original>
// kernel: tpu_custom_call.1
$region0: #{tpu_custom_call.1}
  #allocation0 [shape = 'u32[]', space=smem, size = 0x4, offset = 0x4, fixed_abs, tag = 'smem constant byte address 0x4 - core index']
  #allocation1 [shape = 'u32[144,128]{1,0:T(1,128)}', space=vmem, size = 0x12000, scoped, tag = 'internal scratch']
  %s0 = inlined_call_operand.vmem [shape: f32[16,32], index: 0, kind: input, shape index: {}]
  %s1 = inlined_call_operand.vmem [shape: f32[16,32], index: 1, kind: input, shape index: {}]
  %s2 = inlined_call_operand.vmem [shape: bf16[32,32], index: 2, kind: input, shape index: {}]
  %s3 = inlined_call_operand.vmem [shape: f32[1,32], index: 3, kind: input, shape index: {}]
  %s4 = inlined_call_operand.vmem [shape: bf16[32,128], index: 4, kind: input, shape index: {}]
  %s5 = inlined_call_operand.vmem [shape: f32[1,128], index: 5, kind: input, shape index: {}]
  %s6 = inlined_call_operand.vmem [shape: bf16[128,32], index: 6, kind: input, shape index: {}]
  %s7 = inlined_call_operand.vmem [shape: f32[1,32], index: 7, kind: input, shape index: {}]
  %s8 = inlined_call_operand.vmem [shape: f32[1,32], index: 8, kind: input, shape index: {}]
  %s9 = inlined_call_operand.vmem [shape: f32[1,32], index: 9, kind: input, shape index: {}]
  %s10 = inlined_call_operand.vmem [shape: f32[1,32], index: 10, kind: input, shape index: {}]
  %s11 = inlined_call_operand.hbm [shape: f32[16,32], index: 11, kind: output, shape index: {}]
  %s12 = sld [smem:[#allocation0]]
  $region54: #{tpu_custom_call.1} parent=0
    _
  %s14 = ssub.s32 1, %s12
  %s15 = scalar_select 0, %s14, %s12
  $region1: #{tpu_custom_call.1} parent=0
    #allocation2 [shape = 'u8[8192]{0}', space=vmem, size = 0x2000, scoped, tag = 'output window, operand 0, single buffered']
    #allocation3 [shape = 's32[1]{0}', space=sflag, size = 0x4, scoped, tag = 'scoped memory for tpu_custom_call.1']
    %16 = vsyncpa [#allocation3], 0
    // Predicated region
    $region2: #{tpu_custom_call.1} parent=1 // pred_check
      _
    $region3: #{tpu_custom_call.1} parent=1 // pred_check_branch
      %18 = sbr.rel (0) target = $region5
    $region4: #{tpu_custom_call.1} parent=1 // pred_region
      _
    $region5: #{tpu_custom_call.1} parent=1 // pred_fallthru
      _
    // Predicated region
    $region6: #{tpu_custom_call.1} parent=1 // pred_check
      _
    $region7: #{tpu_custom_call.1} parent=1 // pred_check_branch
      %20 = sbr.rel (0) target = $region9
    $region8: #{tpu_custom_call.1} parent=1 // pred_region
      _
    $region9: #{tpu_custom_call.1} parent=1 // pred_fallthru
      _
    // Predicated region
    $region10: #{tpu_custom_call.1} parent=1 // pred_check
      _
    $region11: #{tpu_custom_call.1} parent=1 // pred_check_branch
      %22 = sbr.rel (0) target = $region13
    $region12: #{tpu_custom_call.1} parent=1 // pred_region
      _
    $region13: #{tpu_custom_call.1} parent=1 // pred_fallthru
      _
    // Predicated region
    $region14: #{tpu_custom_call.1} parent=1 // pred_check
      _
    $region15: #{tpu_custom_call.1} parent=1 // pred_check_branch
      %24 = sbr.rel (0) target = $region17
    $region16: #{tpu_custom_call.1} parent=1 // pred_region
      _
    $region17: #{tpu_custom_call.1} parent=1 // pred_fallthru
      _
    // Predicated region
    $region18: #{tpu_custom_call.1} parent=1 // pred_check
      _
    $region19: #{tpu_custom_call.1} parent=1 // pred_check_branch
      %26 = sbr.rel (0) target = $region21
    $region20: #{tpu_custom_call.1} parent=1 // pred_region
      _
    $region21: #{tpu_custom_call.1} parent=1 // pred_fallthru
      _
    // Predicated region
    $region22: #{tpu_custom_call.1} parent=1 // pred_check
      _
    $region23: #{tpu_custom_call.1} parent=1 // pred_check_branch
      %28 = sbr.rel (0) target = $region25
    $region24: #{tpu_custom_call.1} parent=1 // pred_region
      _
    $region25: #{tpu_custom_call.1} parent=1 // pred_fallthru
      _
    // Predicated region
    $region26: #{tpu_custom_call.1} parent=1 // pred_check
      _
    $region27: #{tpu_custom_call.1} parent=1 // pred_check_branch
      %30 = sbr.rel (0) target = $region29
    $region28: #{tpu_custom_call.1} parent=1 // pred_region
      _
    $region29: #{tpu_custom_call.1} parent=1 // pred_fallthru
      _
    // Predicated region
    $region30: #{tpu_custom_call.1} parent=1 // pred_check
      _
    $region31: #{tpu_custom_call.1} parent=1 // pred_check_branch
      %32 = sbr.rel (0) target = $region33
    $region32: #{tpu_custom_call.1} parent=1 // pred_region
      _
    $region33: #{tpu_custom_call.1} parent=1 // pred_fallthru
      _
    // Predicated region
    $region34: #{tpu_custom_call.1} parent=1 // pred_check
      _
    $region35: #{tpu_custom_call.1} parent=1 // pred_check_branch
      %34 = sbr.rel (0) target = $region37
    $region36: #{tpu_custom_call.1} parent=1 // pred_region
      _
    $region37: #{tpu_custom_call.1} parent=1 // pred_fallthru
      _
    // Predicated region
    $region38: #{tpu_custom_call.1} parent=1 // pred_check
      _
    $region39: #{tpu_custom_call.1} parent=1 // pred_check_branch
      %36 = sbr.rel (0) target = $region41
    $region40: #{tpu_custom_call.1} parent=1 // pred_region
      _
    $region41: #{tpu_custom_call.1} parent=1 // pred_fallthru
      _
    // Predicated region
    $region42: #{tpu_custom_call.1} parent=1 // pred_check
      _
    $region43: #{tpu_custom_call.1} parent=1 // pred_check_branch
      %38 = sbr.rel (0) target = $region45
    $region44: #{tpu_custom_call.1} parent=1 // pred_region
      _
    $region45: #{tpu_custom_call.1} parent=1 // pred_fallthru
      _
    %v40 = vld [vmem:[%s0] sm:$0xff]
    %v41 = vld [vmem:[%s0 + $0x8] sm:$0xff]
    %v42 = vpack.c.bf16 %v41, %v40
    %v43 = vld [vmem:[%s2] sm:$0xf]
    %v44 = vld [vmem:[%s2 + $0x4] sm:$0xf]
    %v45 = vld [vmem:[%s2 + $0x8] sm:$0xf]
    %v46 = vld [vmem:[%s2 + $0xc] sm:$0xf]
    %v47 = vld [vmem:[%s3] sm:$0x1]
    %v49 = vlaneseq
    %v50 = vshrl.u32 %v49, 7
    %v51 = vsub.s32 0, %v50
    %v52 = vrot.slane %v47, %v51
    %v58 = vunpack.c.l.b16 %v43
    %v59 = vunpack.c.l.b16 %v44
    %v60 = vunpack.c.l.b16 %v45
    %v61 = vunpack.c.l.b16 %v46
    %v62 = vpack.c.b16 %v59, %v58
    %v63 = vpack.c.b16 %v61, %v60
    %vm66 = vcmask 261120
    %v68 = vsel %vm66, %v42, 0
    %70 = vmatprep.subr.bf16.mxu0 0
    %71 = vmatpush1.bf16.msra.mxu0 %v62
    %72 = vmatprep.subr.bf16.mxu0 0
    %73 = vmatpush1.bf16.msra.mxu0 %v63
    %74 = vmatprep.subr.bf16.mxu0 0
    %75 = vmatpush1.bf16.msra.mxu0 0
    %76 = vmatprep.subr.bf16.mxu0 0
    %77 = vmatpush1.bf16.msra.mxu0 0
    %78 = vmatprep.subr.bf16.mxu0 0
    %79 = vmatpush1.bf16.msra.mxu0 0
    %80 = vmatprep.subr.bf16.mxu0 0
    %81 = vmatpush1.bf16.msra.mxu0 0
    %82 = vmatprep.subr.bf16.mxu0 0
    %83 = vmatpush1.bf16.msra.mxu0 0
    %84 = vmatprep.subr.bf16.mxu0 0
    %85 = vmatpush1.bf16.msra.mxu0 0
    %86 = vmatprep.subr.bf16.mxu0 0
    %87 = vmatpush1.bf16.msra.mxu0 0
    %88 = vmatprep.subr.bf16.mxu0 0
    %89 = vmatpush1.bf16.msra.mxu0 0
    %90 = vmatprep.subr.bf16.mxu0 0
    %91 = vmatpush1.bf16.msra.mxu0 0
    %92 = vmatprep.subr.bf16.mxu0 0
    %93 = vmatpush1.bf16.msra.mxu0 0
    %94 = vmatprep.subr.bf16.mxu0 0
    %95 = vmatpush1.bf16.msra.mxu0 0
    %96 = vmatprep.subr.bf16.mxu0 0
    %97 = vmatpush1.bf16.msra.mxu0 0
    %98 = vmatprep.subr.bf16.mxu0 0
    %99 = vmatpush1.bf16.msra.mxu0 0
    %100 = vmatprep.subr.bf16.mxu0 0
    %101 = vmatpush1.bf16.msra.mxu0 0
    %102 = vmatprep.mubr.bf16.mxu0 0
    %103 = vmatmul.mubr.bf16.gmra.mrb[0].mxu0 %v68
    %v104 = vpop.f32.mrb[0].mxu0
    %v105 = vadd.f32 %v52, %v104
    %v106 = vpop.f32.mrb[0].mxu0
    %v107 = vpop.f32.mrb[0].mxu0
    %v108 = vadd.f32 %v52, %v107
    %v109 = vpop.f32.mrb[0].mxu0
    %110 = vdwg.mxu0
    %v111 = vpack.c.bf16 %v108, %v105
    %v112 = vld [vmem:[%s4] sm:$0xf]
    %v113 = vld [vmem:[%s4 + $0x4] sm:$0xf]
    %v114 = vld [vmem:[%s4 + $0x8] sm:$0xf]
    %v115 = vld [vmem:[%s4 + $0xc] sm:$0xf]
    %v116 = vld [vmem:[%s5] sm:$0x1]
    %v118 = vlaneseq
    %v119 = vshrl.u32 %v118, 7
    %v120 = vsub.s32 0, %v119
    %v121 = vrot.slane %v116, %v120
    %v127 = vunpack.c.l.b16 %v112
    %v128 = vunpack.c.l.b16 %v113
    %v129 = vunpack.c.l.b16 %v114
    %v130 = vunpack.c.l.b16 %v115
    %v131 = vpack.c.b16 %v128, %v127
    %v132 = vpack.c.b16 %v130, %v129
    %v136 = vsel %vm66, %v111, 0
    %138 = vmatprep.subr.bf16.mxu0 0
    %139 = vmatpush1.bf16.msra.mxu0 %v131
    %140 = vmatprep.subr.bf16.mxu0 0
    %141 = vmatpush1.bf16.msra.mxu0 %v132
    %142 = vmatprep.subr.bf16.mxu0 0
    %143 = vmatpush1.bf16.msra.mxu0 0
    %144 = vmatprep.subr.bf16.mxu0 0
    %145 = vmatpush1.bf16.msra.mxu0 0
    %146 = vmatprep.subr.bf16.mxu0 0
    %147 = vmatpush1.bf16.msra.mxu0 0
    %148 = vmatprep.subr.bf16.mxu0 0
    %149 = vmatpush1.bf16.msra.mxu0 0
    %150 = vmatprep.subr.bf16.mxu0 0
    %151 = vmatpush1.bf16.msra.mxu0 0
    %152 = vmatprep.subr.bf16.mxu0 0
    %153 = vmatpush1.bf16.msra.mxu0 0
    %154 = vmatprep.subr.bf16.mxu0 0
    %155 = vmatpush1.bf16.msra.mxu0 0
    %156 = vmatprep.subr.bf16.mxu0 0
    %157 = vmatpush1.bf16.msra.mxu0 0
    %158 = vmatprep.subr.bf16.mxu0 0
    %159 = vmatpush1.bf16.msra.mxu0 0
    %160 = vmatprep.subr.bf16.mxu0 0
    %161 = vmatpush1.bf16.msra.mxu0 0
    %162 = vmatprep.subr.bf16.mxu0 0
    %163 = vmatpush1.bf16.msra.mxu0 0
    %164 = vmatprep.subr.bf16.mxu0 0
    %165 = vmatpush1.bf16.msra.mxu0 0
    %166 = vmatprep.subr.bf16.mxu0 0
    %167 = vmatpush1.bf16.msra.mxu0 0
    %168 = vmatprep.subr.bf16.mxu0 0
    %169 = vmatpush1.bf16.msra.mxu0 0
    %170 = vmatprep.mubr.bf16.mxu0 0
    %171 = vmatmul.mubr.bf16.gmra.mrb[0].mxu0 %v136
    %v172 = vpop.f32.mrb[0].mxu0
    %v173 = vadd.f32 %v121, %v172
    %v174 = vpop.f32.mrb[0].mxu0
    %v175 = vpop.f32.mrb[0].mxu0
    %v176 = vadd.f32 %v121, %v175
    %v177 = vpop.f32.mrb[0].mxu0
    %178 = vdwg.mxu0
    %v179 = vmax.f32 %v173, 0.0
    %v180 = vmax.f32 %v176, 0.0
    %v181 = vpack.c.bf16 %v180, %v179
    %v182 = vld [vmem:[%s6] sm:$0xf]
    %v183 = vld [vmem:[%s6 + $0x4] sm:$0xf]
    %v184 = vld [vmem:[%s6 + $0x8] sm:$0xf]
    %v185 = vld [vmem:[%s6 + $0xc] sm:$0xf]
    %v186 = vld [vmem:[%s6 + $0x10] sm:$0xf]
    %v187 = vld [vmem:[%s6 + $0x14] sm:$0xf]
    %v188 = vld [vmem:[%s6 + $0x18] sm:$0xf]
    %v189 = vld [vmem:[%s6 + $0x1c] sm:$0xf]
    %v190 = vld [vmem:[%s6 + $0x20] sm:$0xf]
    %v191 = vld [vmem:[%s6 + $0x24] sm:$0xf]
    %v192 = vld [vmem:[%s6 + $0x28] sm:$0xf]
    %v193 = vld [vmem:[%s6 + $0x2c] sm:$0xf]
    %v194 = vld [vmem:[%s6 + $0x30] sm:$0xf]
    %v195 = vld [vmem:[%s6 + $0x34] sm:$0xf]
    %v196 = vld [vmem:[%s6 + $0x38] sm:$0xf]
    %v197 = vld [vmem:[%s6 + $0x3c] sm:$0xf]
    %v198 = vld [vmem:[%s7] sm:$0x1]
    %v200 = vlaneseq
    %v201 = vshrl.u32 %v200, 7
    %v202 = vsub.s32 0, %v201
    %v203 = vrot.slane %v198, %v202
    %v221 = vunpack.c.l.b16 %v182
    %v222 = vunpack.c.l.b16 %v183
    %v223 = vunpack.c.l.b16 %v184
    %v224 = vunpack.c.l.b16 %v185
    %v225 = vunpack.c.l.b16 %v186
    %v226 = vunpack.c.l.b16 %v187
    %v227 = vunpack.c.l.b16 %v188
    %v228 = vunpack.c.l.b16 %v189
    %v229 = vunpack.c.l.b16 %v190
    %v230 = vunpack.c.l.b16 %v191
    %v231 = vunpack.c.l.b16 %v192
    %v232 = vunpack.c.l.b16 %v193
    %v233 = vunpack.c.l.b16 %v194
    %v234 = vunpack.c.l.b16 %v195
    %v235 = vunpack.c.l.b16 %v196
    %v236 = vunpack.c.l.b16 %v197
    %v237 = vpack.c.b16 %v222, %v221
    %v238 = vpack.c.b16 %v224, %v223
    %v239 = vpack.c.b16 %v226, %v225
    %v240 = vpack.c.b16 %v228, %v227
    %v241 = vpack.c.b16 %v230, %v229
    %v242 = vpack.c.b16 %v232, %v231
    %v243 = vpack.c.b16 %v234, %v233
    %v244 = vpack.c.b16 %v236, %v235
    %253 = vmatprep.subr.bf16.mxu0 0
    %254 = vmatpush1.bf16.msra.mxu0 %v237
    %255 = vmatprep.subr.bf16.mxu0 0
    %256 = vmatpush1.bf16.msra.mxu0 %v238
    %257 = vmatprep.subr.bf16.mxu0 0
    %258 = vmatpush1.bf16.msra.mxu0 %v239
    %259 = vmatprep.subr.bf16.mxu0 0
    %260 = vmatpush1.bf16.msra.mxu0 %v240
    %261 = vmatprep.subr.bf16.mxu0 0
    %262 = vmatpush1.bf16.msra.mxu0 %v241
    %263 = vmatprep.subr.bf16.mxu0 0
    %264 = vmatpush1.bf16.msra.mxu0 %v242
    %265 = vmatprep.subr.bf16.mxu0 0
    %266 = vmatpush1.bf16.msra.mxu0 %v243
    %267 = vmatprep.subr.bf16.mxu0 0
    %268 = vmatpush1.bf16.msra.mxu0 %v244
    %269 = vmatprep.subr.bf16.mxu0 0
    %270 = vmatpush1.bf16.msra.mxu0 0
    %271 = vmatprep.subr.bf16.mxu0 0
    %272 = vmatpush1.bf16.msra.mxu0 0
    %273 = vmatprep.subr.bf16.mxu0 0
    %274 = vmatpush1.bf16.msra.mxu0 0
    %275 = vmatprep.subr.bf16.mxu0 0
    %276 = vmatpush1.bf16.msra.mxu0 0
    %277 = vmatprep.subr.bf16.mxu0 0
    %278 = vmatpush1.bf16.msra.mxu0 0
    %279 = vmatprep.subr.bf16.mxu0 0
    %280 = vmatpush1.bf16.msra.mxu0 0
    %281 = vmatprep.subr.bf16.mxu0 0
    %282 = vmatpush1.bf16.msra.mxu0 0
    %283 = vmatprep.subr.bf16.mxu0 0
    %284 = vmatpush1.bf16.msra.mxu0 0
    %285 = vmatprep.mubr.bf16.mxu0 0
    %286 = vmatmul.mubr.bf16.gmra.mrb[0].mxu0 %v181
    %v287 = vpop.f32.mrb[0].mxu0
    %v288 = vadd.f32 %v203, %v287
    %v289 = vpop.f32.mrb[0].mxu0
    %v290 = vpop.f32.mrb[0].mxu0
    %v291 = vadd.f32 %v203, %v290
    %v292 = vpop.f32.mrb[0].mxu0
    %293 = vdwg.mxu0
    %v294 = vmax.f32 %v288, 0.0
    %v295 = vmax.f32 %v291, 0.0
    %v296 = vld [vmem:[%s8] sm:$0x1]
    %v298 = vlaneseq
    %v299 = vshrl.u32 %v298, 7
    %v300 = vsub.s32 0, %v299
    %v301 = vrot.slane %v296, %v300
    %v303 = vmul.f32 %v294, %v301
    %v304 = vmul.f32 %v295, %v301
    %v305 = vadd.f32 %v105, %v303
    %v306 = vadd.f32 %v108, %v304
    %v307 = vld [vmem:[%s1] sm:$0xff]
    %v308 = vld [vmem:[%s1 + $0x8] sm:$0xff]
    %v309 = vadd.f32 %v305, %v307
    %v310 = vadd.f32 %v306, %v308
    %v311 = vsel %vm66, %v309, 0.0
    %312 = vadd.xlane.f32.xlu0 %v311
    %v313 = vpop.xlane.xlu0 %312
    %v314 = vsel %vm66, %v310, 0.0
    %315 = vadd.xlane.f32.xlu0 %v314
    %v316 = vpop.xlane.xlu0 %315
    %v317 = vrcp.pop 32.0
    %v318 = vmul.f32 %v313, %v317
    %v319 = vmul.f32 %v316, %v317
    %v320 = vsub.f32 %v309, %v318
    %v321 = vsub.f32 %v310, %v319
    %v322 = vmul.f32 %v320, %v320
    %v323 = vmul.f32 %v321, %v321
    %v324 = vsel %vm66, %v322, 0.0
    %325 = vadd.xlane.f32.xlu0 %v324
    %v326 = vpop.xlane.xlu0 %325
    %v327 = vsel %vm66, %v323, 0.0
    %328 = vadd.xlane.f32.xlu0 %v327
    %v329 = vpop.xlane.xlu0 %328
    %v330 = vmul.f32 %v326, %v317
    %v331 = vmul.f32 %v329, %v317
    %v332 = vadd.f32 %v330, 1e-12
    %v333 = vadd.f32 %v331, 1e-12
    %v334 = vrsqrt.pop %v332
    %v335 = vrsqrt.pop %v333
    %v336 = vmul.f32 %v320, %v334
    %v337 = vmul.f32 %v321, %v335
    %v338 = vld [vmem:[%s9] sm:$0x1]
    %v340 = vlaneseq
    %v341 = vshrl.u32 %v340, 7
    %v342 = vsub.s32 0, %v341
    %v343 = vrot.slane %v338, %v342
    %v345 = vmul.f32 %v336, %v343
    %v346 = vmul.f32 %v337, %v343
    %v347 = vld [vmem:[%s10] sm:$0x1]
    %v349 = vlaneseq
    %v350 = vshrl.u32 %v349, 7
    %v351 = vsub.s32 0, %v350
    %v352 = vrot.slane %v347, %v351
    %v354 = vadd.f32 %v345, %v352
    %v355 = vadd.f32 %v346, %v352
    %356 = vst.msk [vmem:[#allocation2] sm:$0xff] %vm66, %v354
    %357 = vst.msk [vmem:[#allocation2 + $0x8] sm:$0xff] %vm66, %v355
    // Predicated region
    $region46: #{tpu_custom_call.1} parent=1 // pred_check
      _
    $region47: #{tpu_custom_call.1} parent=1 // pred_check_branch
      %359 = sbr.rel (0) target = $region49
    $region48: #{tpu_custom_call.1} parent=1 // pred_region
      %s361 = ssub.s32 256, 256
      %362 = vsyncadd [#allocation3], %s361
      %s363 = sshll.u32 [#allocation2], 4
      %s364 = int_to_ptr.vmem [resolvable:$true] %s363
      %369 = dma.vmem_to_hbm [thread:$0]  %s364, 256, %s11, [#allocation3], 128, 128, 8
    $region49: #{tpu_custom_call.1} parent=1 // pred_fallthru
      _
    // Predicated region
    $region50: #{tpu_custom_call.1} parent=1 // pred_check
      _
    $region51: #{tpu_custom_call.1} parent=1 // pred_check_branch
      %371 = sbr.rel (0) target = $region53
    $region52: #{tpu_custom_call.1} parent=1 // pred_region
      %372 = dma.done [#allocation3], 256
    $region53: #{tpu_custom_call.1} parent=1 // pred_fallthru
      _
    %373 = vsyncpa [#allocation3], 1

// kernel: tpu_custom_call.1
$region0: #{tpu_custom_call.1}
  #allocation0 [shape = 'u32[]', space=smem, size = 0x4, offset = 0x4, fixed_abs, tag = 'smem constant byte address 0x4 - core index']
  #allocation1 [shape = 'u32[144,128]{1,0:T(1,128)}', space=vmem, size = 0x12000, scoped, tag = 'internal scratch']
  %s0 = inlined_call_operand.vmem [shape: f32[16,32], index: 0, kind: input, shape index: {}]
  %s1 = inlined_call_operand.vmem [shape: f32[16,32], index: 1, kind: input, shape index: {}]
  %s2 = inlined_call_operand.vmem [shape: bf16[32,32], index: 2, kind: input, shape index: {}]
  %s3 = inlined_call_operand.vmem [shape: f32[1,32], index: 3, kind: input, shape index: {}]
  %s4 = inlined_call_operand.vmem [shape: bf16[32,128], index: 4, kind: input, shape index: {}]
  %s5 = inlined_call_operand.vmem [shape: f32[1,128], index: 5, kind: input, shape index: {}]
  %s6 = inlined_call_operand.vmem [shape: bf16[128,32], index: 6, kind: input, shape index: {}]
  %s7 = inlined_call_operand.vmem [shape: f32[1,32], index: 7, kind: input, shape index: {}]
  %s8 = inlined_call_operand.vmem [shape: f32[1,32], index: 8, kind: input, shape index: {}]
  %s9 = inlined_call_operand.vmem [shape: f32[1,32], index: 9, kind: input, shape index: {}]
  %s10 = inlined_call_operand.vmem [shape: f32[1,32], index: 10, kind: input, shape index: {}]
  %s11 = inlined_call_operand.hbm [shape: f32[16,32], index: 11, kind: output, shape index: {}]
  %s12 = sld [smem:[#allocation0]]
  $region54: #{tpu_custom_call.1} parent=0
    _
  %s14 = ssub.s32 1, %s12
  %s15 = scalar_select 0, %s14, %s12
  $region1: #{tpu_custom_call.1} parent=0
    #allocation2 [shape = 'u8[8192]{0}', space=vmem, size = 0x2000, scoped, tag = 'output window, operand 0, single buffered']
    #allocation3 [shape = 's32[1]{0}', space=sflag, size = 0x4, scoped, tag = 'scoped memory for tpu_custom_call.1']
    %16 = vsyncpa [#allocation3], 0
    // Predicated region
    $region2: #{tpu_custom_call.1} parent=1 // pred_check
      _
    $region3: #{tpu_custom_call.1} parent=1 // pred_check_branch
      %18 = sbr.rel (0) target = $region5
    $region4: #{tpu_custom_call.1} parent=1 // pred_region
      _
    $region5: #{tpu_custom_call.1} parent=1 // pred_fallthru
      _
    // Predicated region
    $region6: #{tpu_custom_call.1} parent=1 // pred_check
      _
    $region7: #{tpu_custom_call.1} parent=1 // pred_check_branch
      %20 = sbr.rel (0) target = $region9
    $region8: #{tpu_custom_call.1} parent=1 // pred_region
      _
    $region9: #{tpu_custom_call.1} parent=1 // pred_fallthru
      _
    // Predicated region
    $region10: #{tpu_custom_call.1} parent=1 // pred_check
      _
    $region11: #{tpu_custom_call.1} parent=1 // pred_check_branch
      %22 = sbr.rel (0) target = $region13
    $region12: #{tpu_custom_call.1} parent=1 // pred_region
      _
    $region13: #{tpu_custom_call.1} parent=1 // pred_fallthru
      _
    // Predicated region
    $region14: #{tpu_custom_call.1} parent=1 // pred_check
      _
    $region15: #{tpu_custom_call.1} parent=1 // pred_check_branch
      %24 = sbr.rel (0) target = $region17
    $region16: #{tpu_custom_call.1} parent=1 // pred_region
      _
    $region17: #{tpu_custom_call.1} parent=1 // pred_fallthru
      _
    // Predicated region
    $region18: #{tpu_custom_call.1} parent=1 // pred_check
      _
    $region19: #{tpu_custom_call.1} parent=1 // pred_check_branch
      %26 = sbr.rel (0) target = $region21
    $region20: #{tpu_custom_call.1} parent=1 // pred_region
      _
    $region21: #{tpu_custom_call.1} parent=1 // pred_fallthru
      _
    // Predicated region
    $region22: #{tpu_custom_call.1} parent=1 // pred_check
      _
    $region23: #{tpu_custom_call.1} parent=1 // pred_check_branch
      %28 = sbr.rel (0) target = $region25
    $region24: #{tpu_custom_call.1} parent=1 // pred_region
      _
    $region25: #{tpu_custom_call.1} parent=1 // pred_fallthru
      _
    // Predicated region
    $region26: #{tpu_custom_call.1} parent=1 // pred_check
      _
    $region27: #{tpu_custom_call.1} parent=1 // pred_check_branch
      %30 = sbr.rel (0) target = $region29
    $region28: #{tpu_custom_call.1} parent=1 // pred_region
      _
    $region29: #{tpu_custom_call.1} parent=1 // pred_fallthru
      _
    // Predicated region
    $region30: #{tpu_custom_call.1} parent=1 // pred_check
      _
    $region31: #{tpu_custom_call.1} parent=1 // pred_check_branch
      %32 = sbr.rel (0) target = $region33
    $region32: #{tpu_custom_call.1} parent=1 // pred_region
      _
    $region33: #{tpu_custom_call.1} parent=1 // pred_fallthru
      _
    // Predicated region
    $region34: #{tpu_custom_call.1} parent=1 // pred_check
      _
    $region35: #{tpu_custom_call.1} parent=1 // pred_check_branch
      %34 = sbr.rel (0) target = $region37
    $region36: #{tpu_custom_call.1} parent=1 // pred_region
      _
    $region37: #{tpu_custom_call.1} parent=1 // pred_fallthru
      _
    // Predicated region
    $region38: #{tpu_custom_call.1} parent=1 // pred_check
      _
    $region39: #{tpu_custom_call.1} parent=1 // pred_check_branch
      %36 = sbr.rel (0) target = $region41
    $region40: #{tpu_custom_call.1} parent=1 // pred_region
      _
    $region41: #{tpu_custom_call.1} parent=1 // pred_fallthru
      _
    // Predicated region
    $region42: #{tpu_custom_call.1} parent=1 // pred_check
      _
    $region43: #{tpu_custom_call.1} parent=1 // pred_check_branch
      %38 = sbr.rel (0) target = $region45
    $region44: #{tpu_custom_call.1} parent=1 // pred_region
      _
    $region45: #{tpu_custom_call.1} parent=1 // pred_fallthru
      _
    %v40 = vld [vmem:[%s0] sm:$0xff]
    %v41 = vld [vmem:[%s0 + $0x8] sm:$0xff]
    %v42 = vpack.c.bf16 %v41, %v40
    %v43 = vld [vmem:[%s2] sm:$0xf]
    %v44 = vld [vmem:[%s2 + $0x4] sm:$0xf]
    %v45 = vld [vmem:[%s2 + $0x8] sm:$0xf]
    %v46 = vld [vmem:[%s2 + $0xc] sm:$0xf]
    %v47 = vld [vmem:[%s3] sm:$0x1]
    %v49 = vlaneseq
    %v50 = vshrl.u32 %v49, 7
    %v51 = vsub.s32 0, %v50
    %v52 = vrot.slane %v47, %v51
    %v58 = vunpack.c.l.b16 %v43
    %v59 = vunpack.c.l.b16 %v44
    %v60 = vunpack.c.l.b16 %v45
    %v61 = vunpack.c.l.b16 %v46
    %v62 = vpack.c.b16 %v59, %v58
    %v63 = vpack.c.b16 %v61, %v60
    %vm66 = vcmask 261120
    %v68 = vsel %vm66, %v42, 0
    %70 = vmatprep.subr.bf16.mxu0 0
    %71 = vmatpush1.bf16.msra.mxu0 %v62
    %72 = vmatprep.subr.bf16.mxu0 0
    %73 = vmatpush1.bf16.msra.mxu0 %v63
    %74 = vmatprep.subr.bf16.mxu0 0
    %75 = vmatpush1.bf16.msra.mxu0 0
    %76 = vmatprep.subr.bf16.mxu0 0
    %77 = vmatpush1.bf16.msra.mxu0 0
    %78 = vmatprep.subr.bf16.mxu0 0
    %79 = vmatpush1.bf16.msra.mxu0 0
    %80 = vmatprep.subr.bf16.mxu0 0
    %81 = vmatpush1.bf16.msra.mxu0 0
    %82 = vmatprep.subr.bf16.mxu0 0
    %83 = vmatpush1.bf16.msra.mxu0 0
    %84 = vmatprep.subr.bf16.mxu0 0
    %85 = vmatpush1.bf16.msra.mxu0 0
    %86 = vmatprep.subr.bf16.mxu0 0
    %87 = vmatpush1.bf16.msra.mxu0 0
    %88 = vmatprep.subr.bf16.mxu0 0
    %89 = vmatpush1.bf16.msra.mxu0 0
    %90 = vmatprep.subr.bf16.mxu0 0
    %91 = vmatpush1.bf16.msra.mxu0 0
    %92 = vmatprep.subr.bf16.mxu0 0
    %93 = vmatpush1.bf16.msra.mxu0 0
    %94 = vmatprep.subr.bf16.mxu0 0
    %95 = vmatpush1.bf16.msra.mxu0 0
    %96 = vmatprep.subr.bf16.mxu0 0
    %97 = vmatpush1.bf16.msra.mxu0 0
    %98 = vmatprep.subr.bf16.mxu0 0
    %99 = vmatpush1.bf16.msra.mxu0 0
    %100 = vmatprep.subr.bf16.mxu0 0
    %101 = vmatpush1.bf16.msra.mxu0 0
    %102 = vmatprep.mubr.bf16.mxu0 0
    %103 = vmatmul.mubr.bf16.gmra.mrb[0].mxu0 %v68
    %v104 = vpop.f32.mrb[0].mxu0
    %v105 = vadd.f32 %v52, %v104
    %v106 = vpop.f32.mrb[0].mxu0
    %v107 = vpop.f32.mrb[0].mxu0
    %v108 = vadd.f32 %v52, %v107
    %v109 = vpop.f32.mrb[0].mxu0
    %110 = vdwg.mxu0
    %v111 = vpack.c.bf16 %v108, %v105
    %v112 = vld [vmem:[%s4] sm:$0xf]
    %v113 = vld [vmem:[%s4 + $0x4] sm:$0xf]
    %v114 = vld [vmem:[%s4 + $0x8] sm:$0xf]
    %v115 = vld [vmem:[%s4 + $0xc] sm:$0xf]
    %v116 = vld [vmem:[%s5] sm:$0x1]
    %v118 = vlaneseq
    %v119 = vshrl.u32 %v118, 7
    %v120 = vsub.s32 0, %v119
    %v121 = vrot.slane %v116, %v120
    %v127 = vunpack.c.l.b16 %v112
    %v128 = vunpack.c.l.b16 %v113
    %v129 = vunpack.c.l.b16 %v114
    %v130 = vunpack.c.l.b16 %v115
    %v131 = vpack.c.b16 %v128, %v127
    %v132 = vpack.c.b16 %v130, %v129
    %v136 = vsel %vm66, %v111, 0
    %138 = vmatprep.subr.bf16.mxu0 0
    %139 = vmatpush1.bf16.msra.mxu0 %v131
    %140 = vmatprep.subr.bf16.mxu0 0
    %141 = vmatpush1.bf16.msra.mxu0 %v132
    %142 = vmatprep.subr.bf16.mxu0 0
    %143 = vmatpush1.bf16.msra.mxu0 0
    %144 = vmatprep.subr.bf16.mxu0 0
    %145 = vmatpush1.bf16.msra.mxu0 0
    %146 = vmatprep.subr.bf16.mxu0 0
    %147 = vmatpush1.bf16.msra.mxu0 0
    %148 = vmatprep.subr.bf16.mxu0 0
    %149 = vmatpush1.bf16.msra.mxu0 0
    %150 = vmatprep.subr.bf16.mxu0 0
    %151 = vmatpush1.bf16.msra.mxu0 0
    %152 = vmatprep.subr.bf16.mxu0 0
    %153 = vmatpush1.bf16.msra.mxu0 0
    %154 = vmatprep.subr.bf16.mxu0 0
    %155 = vmatpush1.bf16.msra.mxu0 0
    %156 = vmatprep.subr.bf16.mxu0 0
    %157 = vmatpush1.bf16.msra.mxu0 0
    %158 = vmatprep.subr.bf16.mxu0 0
    %159 = vmatpush1.bf16.msra.mxu0 0
    %160 = vmatprep.subr.bf16.mxu0 0
    %161 = vmatpush1.bf16.msra.mxu0 0
    %162 = vmatprep.subr.bf16.mxu0 0
    %163 = vmatpush1.bf16.msra.mxu0 0
    %164 = vmatprep.subr.bf16.mxu0 0
    %165 = vmatpush1.bf16.msra.mxu0 0
    %166 = vmatprep.subr.bf16.mxu0 0
    %167 = vmatpush1.bf16.msra.mxu0 0
    %168 = vmatprep.subr.bf16.mxu0 0
    %169 = vmatpush1.bf16.msra.mxu0 0
    %170 = vmatprep.mubr.bf16.mxu0 0
    %171 = vmatmul.mubr.bf16.gmra.mrb[0].mxu0 %v136
    %v172 = vpop.f32.mrb[0].mxu0
    %v173 = vadd.f32 %v121, %v172
    %v174 = vpop.f32.mrb[0].mxu0
    %v175 = vpop.f32.mrb[0].mxu0
    %v176 = vadd.f32 %v121, %v175
    %v177 = vpop.f32.mrb[0].mxu0
    %178 = vdwg.mxu0
    %v179 = vmax.f32 %v173, 0.0
    %v180 = vmax.f32 %v176, 0.0
    %v181 = vpack.c.bf16 %v180, %v179
    %v182 = vld [vmem:[%s6] sm:$0xf]
    %v183 = vld [vmem:[%s6 + $0x4] sm:$0xf]
    %v184 = vld [vmem:[%s6 + $0x8] sm:$0xf]
    %v185 = vld [vmem:[%s6 + $0xc] sm:$0xf]
    %v186 = vld [vmem:[%s6 + $0x10] sm:$0xf]
    %v187 = vld [vmem:[%s6 + $0x14] sm:$0xf]
    %v188 = vld [vmem:[%s6 + $0x18] sm:$0xf]
    %v189 = vld [vmem:[%s6 + $0x1c] sm:$0xf]
    %v190 = vld [vmem:[%s6 + $0x20] sm:$0xf]
    %v191 = vld [vmem:[%s6 + $0x24] sm:$0xf]
    %v192 = vld [vmem:[%s6 + $0x28] sm:$0xf]
    %v193 = vld [vmem:[%s6 + $0x2c] sm:$0xf]
    %v194 = vld [vmem:[%s6 + $0x30] sm:$0xf]
    %v195 = vld [vmem:[%s6 + $0x34] sm:$0xf]
    %v196 = vld [vmem:[%s6 + $0x38] sm:$0xf]
    %v197 = vld [vmem:[%s6 + $0x3c] sm:$0xf]
    %v198 = vld [vmem:[%s7] sm:$0x1]
    %v200 = vlaneseq
    %v201 = vshrl.u32 %v200, 7
    %v202 = vsub.s32 0, %v201
    %v203 = vrot.slane %v198, %v202
    %v221 = vunpack.c.l.b16 %v182
    %v222 = vunpack.c.l.b16 %v183
    %v223 = vunpack.c.l.b16 %v184
    %v224 = vunpack.c.l.b16 %v185
    %v225 = vunpack.c.l.b16 %v186
    %v226 = vunpack.c.l.b16 %v187
    %v227 = vunpack.c.l.b16 %v188
    %v228 = vunpack.c.l.b16 %v189
    %v229 = vunpack.c.l.b16 %v190
    %v230 = vunpack.c.l.b16 %v191
    %v231 = vunpack.c.l.b16 %v192
    %v232 = vunpack.c.l.b16 %v193
    %v233 = vunpack.c.l.b16 %v194
    %v234 = vunpack.c.l.b16 %v195
    %v235 = vunpack.c.l.b16 %v196
    %v236 = vunpack.c.l.b16 %v197
    %v237 = vpack.c.b16 %v222, %v221
    %v238 = vpack.c.b16 %v224, %v223
    %v239 = vpack.c.b16 %v226, %v225
    %v240 = vpack.c.b16 %v228, %v227
    %v241 = vpack.c.b16 %v230, %v229
    %v242 = vpack.c.b16 %v232, %v231
    %v243 = vpack.c.b16 %v234, %v233
    %v244 = vpack.c.b16 %v236, %v235
    %253 = vmatprep.subr.bf16.mxu0 0
    %254 = vmatpush1.bf16.msra.mxu0 %v237
    %255 = vmatprep.subr.bf16.mxu0 0
    %256 = vmatpush1.bf16.msra.mxu0 %v238
    %257 = vmatprep.subr.bf16.mxu0 0
    %258 = vmatpush1.bf16.msra.mxu0 %v239
    %259 = vmatprep.subr.bf16.mxu0 0
    %260 = vmatpush1.bf16.msra.mxu0 %v240
    %261 = vmatprep.subr.bf16.mxu0 0
    %262 = vmatpush1.bf16.msra.mxu0 %v241
    %263 = vmatprep.subr.bf16.mxu0 0
    %264 = vmatpush1.bf16.msra.mxu0 %v242
    %265 = vmatprep.subr.bf16.mxu0 0
    %266 = vmatpush1.bf16.msra.mxu0 %v243
    %267 = vmatprep.subr.bf16.mxu0 0
    %268 = vmatpush1.bf16.msra.mxu0 %v244
    %269 = vmatprep.subr.bf16.mxu0 0
    %270 = vmatpush1.bf16.msra.mxu0 0
    %271 = vmatprep.subr.bf16.mxu0 0
    %272 = vmatpush1.bf16.msra.mxu0 0
    %273 = vmatprep.subr.bf16.mxu0 0
    %274 = vmatpush1.bf16.msra.mxu0 0
    %275 = vmatprep.subr.bf16.mxu0 0
    %276 = vmatpush1.bf16.msra.mxu0 0
    %277 = vmatprep.subr.bf16.mxu0 0
    %278 = vmatpush1.bf16.msra.mxu0 0
    %279 = vmatprep.subr.bf16.mxu0 0
    %280 = vmatpush1.bf16.msra.mxu0 0
    %281 = vmatprep.subr.bf16.mxu0 0
    %282 = vmatpush1.bf16.msra.mxu0 0
    %283 = vmatprep.subr.bf16.mxu0 0
    %284 = vmatpush1.bf16.msra.mxu0 0
    %285 = vmatprep.mubr.bf16.mxu0 0
    %286 = vmatmul.mubr.bf16.gmra.mrb[0].mxu0 %v181
    %v287 = vpop.f32.mrb[0].mxu0
    %v288 = vadd.f32 %v203, %v287
    %v289 = vpop.f32.mrb[0].mxu0
    %v290 = vpop.f32.mrb[0].mxu0
    %v291 = vadd.f32 %v203, %v290
    %v292 = vpop.f32.mrb[0].mxu0
    %293 = vdwg.mxu0
    %v294 = vmax.f32 %v288, 0.0
    %v295 = vmax.f32 %v291, 0.0
    %v296 = vld [vmem:[%s8] sm:$0x1]
    %v298 = vlaneseq
    %v299 = vshrl.u32 %v298, 7
    %v300 = vsub.s32 0, %v299
    %v301 = vrot.slane %v296, %v300
    %v303 = vmul.f32 %v294, %v301
    %v304 = vmul.f32 %v295, %v301
    %v305 = vadd.f32 %v105, %v303
    %v306 = vadd.f32 %v108, %v304
    %v307 = vld [vmem:[%s1] sm:$0xff]
    %v308 = vld [vmem:[%s1 + $0x8] sm:$0xff]
    %v309 = vadd.f32 %v305, %v307
    %v310 = vadd.f32 %v306, %v308
    %v311 = vsel %vm66, %v309, 0.0
    %312 = vadd.xlane.f32.xlu0 %v311
    %v313 = vpop.xlane.xlu0 %312
    %v314 = vsel %vm66, %v310, 0.0
    %315 = vadd.xlane.f32.xlu0 %v314
    %v316 = vpop.xlane.xlu0 %315
    %v317 = vrcp.pop 32.0
    %v318 = vmul.f32 %v313, %v317
    %v319 = vmul.f32 %v316, %v317
    %v320 = vsub.f32 %v309, %v318
    %v321 = vsub.f32 %v310, %v319
    %v322 = vmul.f32 %v320, %v320
    %v323 = vmul.f32 %v321, %v321
    %v324 = vsel %vm66, %v322, 0.0
    %325 = vadd.xlane.f32.xlu0 %v324
    %v326 = vpop.xlane.xlu0 %325
    %v327 = vsel %vm66, %v323, 0.0
    %328 = vadd.xlane.f32.xlu0 %v327
    %v329 = vpop.xlane.xlu0 %328
    %v330 = vmul.f32 %v326, %v317
    %v331 = vmul.f32 %v329, %v317
    %v332 = vadd.f32 %v330, 1e-12
    %v333 = vadd.f32 %v331, 1e-12
    %v334 = vrsqrt.pop %v332
    %v335 = vrsqrt.pop %v333
    %v336 = vmul.f32 %v320, %v334
    %v337 = vmul.f32 %v321, %v335
    %v338 = vld [vmem:[%s9] sm:$0x1]
    %v340 = vlaneseq
    %v341 = vshrl.u32 %v340, 7
    %v342 = vsub.s32 0, %v341
    %v343 = vrot.slane %v338, %v342
    %v345 = vmul.f32 %v336, %v343
    %v346 = vmul.f32 %v337, %v343
    %v347 = vld [vmem:[%s10] sm:$0x1]
    %v349 = vlaneseq
    %v350 = vshrl.u32 %v349, 7
    %v351 = vsub.s32 0, %v350
    %v352 = vrot.slane %v347, %v351
    %v354 = vadd.f32 %v345, %v352
    %v355 = vadd.f32 %v346, %v352
    %356 = vst.msk [vmem:[#allocation2] sm:$0xff] %vm66, %v354
    %357 = vst.msk [vmem:[#allocation2 + $0x8] sm:$0xff] %vm66, %v355
    // Predicated region
    $region46: #{tpu_custom_call.1} parent=1 // pred_check
      _
    $region47: #{tpu_custom_call.1} parent=1 // pred_check_branch
      %359 = sbr.rel (0) target = $region49
    $region48: #{tpu_custom_call.1} parent=1 // pred_region
      %s361 = ssub.s32 256, 256
      %362 = vsyncadd [#allocation3], %s361
      %s363 = sshll.u32 [#allocation2], 4
      %s364 = int_to_ptr.vmem [resolvable:$true] %s363
      %369 = dma.vmem_to_hbm [thread:$0]  %s364, 256, %s11, [#allocation3], 128, 128, 8
    $region49: #{tpu_custom_call.1} parent=1 // pred_fallthru
      _
    // Predicated region
    $region50: #{tpu_custom_call.1} parent=1 // pred_check
      _
    $region51: #{tpu_custom_call.1} parent=1 // pred_check_branch
      %371 = sbr.rel (0) target = $region53
    $region52: #{tpu_custom_call.1} parent=1 // pred_region
      %372 = dma.done [#allocation3], 256
    $region53: #{tpu_custom_call.1} parent=1 // pred_fallthru
      _
    %373 = vsyncpa [#allocation3], 1

</llo_original>
